<compile_context>
chip_gen: v7x
topology: tpu7x:2x2x1
jax: 0.10.0
libtpu: 0.0.40
codegen_flags: <defaults>
</compile_context>

<pallas_src>
import math

import jax
import jax.numpy as jnp
from jax.experimental import pallas as pl
from jax.experimental.pallas import tpu as pltpu

LANE = 128      # TPU lane width: hidden/output weight dims are zero-padded to this.
SUBLANE = 8     # f32 sublane granularity for the batch dim.


def _round_up(n, m):
    return ((n + m - 1) // m) * m


def _qnet_kernel(x_ref, w_ref, b_ref, o_ref):
    """Fused 3-layer MLP.

    x_ref: (TB, in_features)   f32 input rows (NOT lane-padded)
    w_ref: (3, 128, 128)       bf16 packed [W1; W2; W3], zero-padded, (in, out) layout
    b_ref: (3, 128)            f32 packed [b1; b2; b3], zero-padded
    o_ref: (TB, output_size)   f32 logits (narrow, real columns only)
    """
    in_f = x_ref.shape[1]
    out_f = o_ref.shape[1]

    x = x_ref[...].astype(jnp.bfloat16)          # MXU is bf16-native
    b = b_ref[...]                               # tiny; load once, slice the value (f32)

    # linear1 + relu   (Dropout(0.1) in eval mode = identity)
    h = jnp.dot(x, w_ref[0, :in_f, :], preferred_element_type=jnp.float32)
    h = jnp.maximum(h + b[0:1, :], 0.0)

    # linear2 + relu   (Dropout(0.1) in eval mode = identity)
    h = jnp.dot(h.astype(jnp.bfloat16), w_ref[1],
                preferred_element_type=jnp.float32)
    h = jnp.maximum(h + b[1:2, :], 0.0)

    # linear3: full 128-wide MXU pass (MXU shape is not the bottleneck);
    # only the real output columns are stored (masked narrow store is fine).
    out = jnp.dot(h.astype(jnp.bfloat16), w_ref[2],
                  preferred_element_type=jnp.float32) + b[2:3, :]
    o_ref[...] = out[:, :out_f].astype(o_ref.dtype)


def pack_params(params):
    """Pack (w1,b1,w2,b2,w3,b3), w:(in,out), b:(out,), into padded slabs.

    Built once outside the kernel and reused for every forward call, so each
    call issues exactly 3 input DMAs (x, bf16 weight slab, f32 bias slab).
    """
    w1, b1, w2, b2, w3, b3 = params

    def pad_w(w):
        full = jnp.zeros((LANE, LANE), jnp.float32)
        full = full.at[: w.shape[0], : w.shape[1]].set(w.astype(jnp.float32))
        return full.astype(jnp.bfloat16)

    def pad_b(b):
        return jnp.zeros((LANE,), jnp.float32).at[: b.shape[0]].set(b.astype(jnp.float32))

    packed_w = jnp.stack([pad_w(w1), pad_w(w2), pad_w(w3)])   # (3, 128, 128) bf16
    packed_b = jnp.stack([pad_b(b1), pad_b(b2), pad_b(b3)])   # (3, 128)      f32
    return packed_w, packed_b


def linear_qnet_forward(x, packed_w, packed_b, *, output_size,
                        batch_block=2048, latency_threshold=256):
    """Fused Linear_QNet forward. x: (B, input_size) -> (B, output_size) f32.

    batch_block: max rows per grid step (sweepable; keep <= ~4096 on v7x, whose
      VMEM is 64 MiB vs 128 MiB on v5e/v6e).
    latency_threshold: batches at or below this use the zero-grid VMEM path.
    """
    batch, in_features = x.shape
    assert in_features <= LANE and output_size <= LANE

    # Pad batch only to the 8-row sublane (no block-multiple rounding cliff).
    b_pad = _round_up(batch, SUBLANE)
    x_p = x.astype(jnp.float32)
    if b_pad != batch:
        x_p = jnp.pad(x_p, ((0, b_pad - batch), (0, 0)))

    bytes_accessed = (x_p.size * x_p.dtype.itemsize
                      + packed_w.size * packed_w.dtype.itemsize
                      + packed_b.size * packed_b.dtype.itemsize
                      + b_pad * output_size * 4)
    cost = pl.CostEstimate(
        flops=2 * b_pad * (in_features * LANE + LANE * LANE + LANE * LANE),
        transcendentals=0,
        bytes_accessed=bytes_accessed,
    )
    out_shape = jax.ShapeDtypeStruct((b_pad, output_size), jnp.float32)

    gridded = b_pad > latency_threshold
    if not gridded:
        # Tiny / latency-bound case: zero grid, everything VMEM-resident,
        # 3 input DMAs + 1 narrow output DMA, no tiling.
        vmem = pl.BlockSpec(memory_space=pltpu.MemorySpace.VMEM)
        out_p = pl.pallas_call(
            _qnet_kernel,
            out_shape=out_shape,
            in_specs=[vmem, vmem, vmem],
            out_specs=vmem,
            cost_estimate=cost,
        )(x_p, packed_w, packed_b)
    else:
        # Batched case: 1-D parallel grid over the batch (>= 2 steps so v7x can
        # shard across both TensorCores). Weight/bias slabs use constant
        # index_maps and stay VMEM-resident across grid iterations.
        block_rows = min(batch_block, _round_up(pl.cdiv(b_pad, 2), SUBLANE))
        grid = (pl.cdiv(b_pad, block_rows),)
        out_p = pl.pallas_call(
            _qnet_kernel,
            out_shape=out_shape,
            grid=grid,
            in_specs=[
                pl.BlockSpec((block_rows, in_features), lambda i: (i, 0)),
                pl.BlockSpec((3, LANE, LANE), lambda i: (0, 0, 0)),
                pl.BlockSpec((3, LANE), lambda i: (0, 0)),
            ],
            out_specs=pl.BlockSpec((block_rows, output_size), lambda i: (i, 0)),
            compiler_params=pltpu.CompilerParams(
                dimension_semantics=("parallel",)),
            cost_estimate=cost,
        )(x_p, packed_w, packed_b)

    return out_p[:batch] if b_pad != batch else out_p


def init_linear_params(key, in_features, out_features):
    """nn.Linear default init U(-1/sqrt(fan_in), +1/sqrt(fan_in)).

    Weight returned as (in_features, out_features) (transpose of PyTorch's
    (out, in)) so the kernel computes y = x @ W + b directly on the MXU.
    """
    kw, kb = jax.random.split(key)
    bound = 1.0 / math.sqrt(in_features)
    w = jax.random.uniform(kw, (in_features, out_features), jnp.float32, -bound, bound)
    b = jax.random.uniform(kb, (out_features,), jnp.float32, -bound, bound)
    return w, b


def reference_forward_f32(x, params):
    w1, b1, w2, b2, w3, b3 = params
    h = jnp.maximum(x @ w1 + b1, 0.0)
    h = jnp.maximum(h @ w2 + b2, 0.0)
    return h @ w3 + b3


def reference_forward_bf16(x, params):
    """Emulates the kernel's bf16-weight / bf16-activation MXU path in f32."""
    w1, b1, w2, b2, w3, b3 = params
    q = lambda a: a.astype(jnp.bfloat16).astype(jnp.float32)
    h = jnp.maximum(q(x) @ q(w1) + b1, 0.0)
    h = jnp.maximum(q(h) @ q(w2) + b2, 0.0)
    return q(h) @ q(w3) + b3


if __name__ == "__main__":
    # Shapes consistent with Linear_QNet(input_size, hidden_size, output_size).
    input_size, hidden_size, output_size = 16, 32, 4

    key = jax.random.PRNGKey(0)
    kx, k1, k2, k3, kbig = jax.random.split(key, 5)

    w1, b1 = init_linear_params(k1, input_size, hidden_size)
    w2, b2 = init_linear_params(k2, hidden_size, hidden_size)
    w3, b3 = init_linear_params(k3, hidden_size, output_size)
    params = (w1, b1, w2, b2, w3, b3)
    packed_w, packed_b = pack_params(params)   # built once, reused every call

    # --- Small latency-bound path (zero grid, fully VMEM resident) ---------
    batch = 8
    x = jax.random.normal(kx, (batch, input_size), jnp.float32)
    out = linear_qnet_forward(x, packed_w, packed_b, output_size=output_size)
    out = jax.block_until_ready(out)
    assert out.shape == (batch, output_size)
    assert jnp.allclose(out, reference_forward_bf16(x, params), atol=1e-3, rtol=1e-3)
    assert jnp.allclose(out, reference_forward_f32(x, params), atol=5e-2, rtol=5e-2)

    # --- Batched path (parallel grid, sublane-only pad, partial last block) -
    big_batch = 300   # not a multiple of 8 nor of the block -> exercises cdiv + masking
    xb = jax.random.normal(kbig, (big_batch, input_size), jnp.float32)
    outb = linear_qnet_forward(xb, packed_w, packed_b,
                               output_size=output_size,
                               batch_block=128, latency_threshold=64)
    outb = jax.block_until_ready(outb)
    assert outb.shape == (big_batch, output_size)
    assert jnp.allclose(outb, reference_forward_bf16(xb, params), atol=1e-3, rtol=1e-3)
    assert jnp.allclose(outb, reference_forward_f32(xb, params), atol=5e-2, rtol=5e-2)

    print("KERNEL_OK")
</pallas_src>

<mosaic_0001>
module attributes {stable_mosaic.version = 11 : i64} {
  func.func @_qnet_kernel(%arg0: memref<8x16xf32, #tpu.memory_space<vmem>>, %arg1: memref<3x128x128xbf16, #tpu.memory_space<vmem>>, %arg2: memref<3x128xf32, #tpu.memory_space<vmem>>, %arg3: memref<8x4xf32, #tpu.memory_space<vmem>>) attributes {dimension_semantics = [], scalar_prefetch = 0 : i64, scratch_operands = 0 : i64, tpu.core_type = #tpu.core_type<tc>} {
    %c0 = arith.constant 0 : index
    %c0_0 = arith.constant 0 : index
    %0 = vector.load %arg0[%c0, %c0_0] : memref<8x16xf32, #tpu.memory_space<vmem>>, vector<8x16xf32>
    %1 = arith.truncf %0 : vector<8x16xf32> to vector<8x16xbf16>
    %c0_1 = arith.constant 0 : index
    %c0_2 = arith.constant 0 : index
    %2 = vector.load %arg2[%c0_1, %c0_2] : memref<3x128xf32, #tpu.memory_space<vmem>>, vector<3x128xf32>
    %c0_3 = arith.constant 0 : index
    %c0_4 = arith.constant 0 : index
    %c0_5 = arith.constant 0 : index
    %3 = vector.load %arg1[%c0_3, %c0_4, %c0_5] : memref<3x128x128xbf16, #tpu.memory_space<vmem>>, vector<1x16x128xbf16>
    %4 = vector.shape_cast %3 : vector<1x16x128xbf16> to vector<16x128xbf16>
    %cst = arith.constant dense<0.000000e+00> : vector<8x128xf32>
    %5 = tpu.matmul %1, %4, %cst {dimension_numbers = #tpu.dot_dimension_numbers<[1], [0], [0], [1], [0, 0, 1, 1], [], []>} : vector<8x16xbf16>, vector<16x128xbf16>, vector<8x128xf32> -> vector<8x128xf32>
    %6 = vector.extract_strided_slice %2 {offsets = [0, 0], sizes = [1, 128], strides = [1, 1]} : vector<3x128xf32> to vector<1x128xf32>
    %7 = vector.broadcast %6 : vector<1x128xf32> to vector<8x128xf32>
    %8 = arith.addf %5, %7 : vector<8x128xf32>
    %cst_6 = arith.constant 0.000000e+00 : f32
    %9 = vector.broadcast %cst_6 : f32 to vector<8x128xf32>
    %10 = arith.maximumf %8, %9 : vector<8x128xf32>
    %11 = arith.truncf %10 : vector<8x128xf32> to vector<8x128xbf16>
    %c1 = arith.constant 1 : index
    %c0_7 = arith.constant 0 : index
    %c0_8 = arith.constant 0 : index
    %12 = vector.load %arg1[%c1, %c0_7, %c0_8] : memref<3x128x128xbf16, #tpu.memory_space<vmem>>, vector<1x128x128xbf16>
    %13 = vector.shape_cast %12 : vector<1x128x128xbf16> to vector<128x128xbf16>
    %cst_9 = arith.constant dense<0.000000e+00> : vector<8x128xf32>
    %14 = tpu.matmul %11, %13, %cst_9 {dimension_numbers = #tpu.dot_dimension_numbers<[1], [0], [0], [1], [0, 0, 1, 1], [], []>} : vector<8x128xbf16>, vector<128x128xbf16>, vector<8x128xf32> -> vector<8x128xf32>
    %15 = vector.extract_strided_slice %2 {offsets = [1, 0], sizes = [1, 128], strides = [1, 1]} : vector<3x128xf32> to vector<1x128xf32>
    %16 = vector.broadcast %15 : vector<1x128xf32> to vector<8x128xf32>
    %17 = arith.addf %14, %16 : vector<8x128xf32>
    %cst_10 = arith.constant 0.000000e+00 : f32
    %18 = vector.broadcast %cst_10 : f32 to vector<8x128xf32>
    %19 = arith.maximumf %17, %18 : vector<8x128xf32>
    %20 = arith.truncf %19 : vector<8x128xf32> to vector<8x128xbf16>
    %c2 = arith.constant 2 : index
    %c0_11 = arith.constant 0 : index
    %c0_12 = arith.constant 0 : index
    %21 = vector.load %arg1[%c2, %c0_11, %c0_12] : memref<3x128x128xbf16, #tpu.memory_space<vmem>>, vector<1x128x128xbf16>
    %22 = vector.shape_cast %21 : vector<1x128x128xbf16> to vector<128x128xbf16>
    %cst_13 = arith.constant dense<0.000000e+00> : vector<8x128xf32>
    %23 = tpu.matmul %20, %22, %cst_13 {dimension_numbers = #tpu.dot_dimension_numbers<[1], [0], [0], [1], [0, 0, 1, 1], [], []>} : vector<8x128xbf16>, vector<128x128xbf16>, vector<8x128xf32> -> vector<8x128xf32>
    %24 = vector.extract_strided_slice %2 {offsets = [2, 0], sizes = [1, 128], strides = [1, 1]} : vector<3x128xf32> to vector<1x128xf32>
    %25 = vector.broadcast %24 : vector<1x128xf32> to vector<8x128xf32>
    %26 = arith.addf %23, %25 : vector<8x128xf32>
    %27 = vector.extract_strided_slice %26 {offsets = [0, 0], sizes = [8, 4], strides = [1, 1]} : vector<8x128xf32> to vector<8x4xf32>
    %c0_14 = arith.constant 0 : index
    %c0_15 = arith.constant 0 : index
    %28 = vector.load %arg3[%c0_14, %c0_15] : memref<8x4xf32, #tpu.memory_space<vmem>>, vector<8x4xf32>
    tpu.vector_store %arg3[%c0_14, %c0_15], %27 {strides = array<i32>} : memref<8x4xf32, #tpu.memory_space<vmem>>, vector<8x4xf32>,
    return
  }
}

</mosaic_0001>

<llo_original>
// kernel: tpu_custom_call.1
$region0: #{tpu_custom_call.1}
  #allocation0 [shape = 'u32[]', space=smem, size = 0x4, offset = 0x4, fixed_abs, tag = 'smem constant byte address 0x4 - core index']
  #allocation1 [shape = 'u32[144,128]{1,0:T(1,128)}', space=vmem, size = 0x12000, scoped, tag = 'internal scratch']
  %s0 = inlined_call_operand.hbm [shape: f32[8,16], index: 0, kind: input, shape index: {}]
  %s1 = inlined_call_operand.hbm [shape: bf16[3,128,128], index: 1, kind: input, shape index: {}]
  %s2 = inlined_call_operand.vmem [shape: f32[3,128], index: 2, kind: input, shape index: {}]
  %s3 = inlined_call_operand.vmem [shape: f32[8,4], index: 3, kind: output, shape index: {}]
  %s4 = sld [smem:[#allocation0]]
  $region30: #{tpu_custom_call.1} parent=0
    _
  %s6 = ssub.s32 1, %s4
  %s7 = scalar_select 0, %s6, %s4
  $region1: #{tpu_custom_call.1} parent=0
    #allocation2 [shape = 'u8[4096]{0}', space=vmem, size = 0x1000, scoped, tag = 'input window, operand 0, single buffered']
    #allocation3 [shape = 's32[1]{0}', space=sflag, size = 0x4, scoped, tag = 'scoped memory for tpu_custom_call.1']
    #allocation4 [shape = 'u8[98304]{0}', space=vmem, size = 0x18000, scoped, tag = 'input window, operand 1, single buffered']
    #allocation5 [shape = 's32[1]{0}', space=sflag, size = 0x4, scoped, tag = 'scoped memory for tpu_custom_call.1']
    %8 = vsyncpa [#allocation3], 0
    %9 = vsyncpa [#allocation5], 0
    // Predicated region
    $region2: #{tpu_custom_call.1} parent=1 // pred_check
      _
    $region3: #{tpu_custom_call.1} parent=1 // pred_check_branch
      %11 = sbr.rel (0) target = $region5
    $region4: #{tpu_custom_call.1} parent=1 // pred_region
      %s13 = ssub.s32 128, 128
      %14 = vsyncadd [#allocation3], %s13
      %s16 = sshll.u32 [#allocation2], 4
      %s17 = int_to_ptr.vmem [resolvable:$true] %s16
      %19 = dma.hbm_to_vmem [thread:$0]  %s0, 128, %s17, [#allocation3]
    $region5: #{tpu_custom_call.1} parent=1 // pred_fallthru
      _
    // Predicated region
    $region6: #{tpu_custom_call.1} parent=1 // pred_check
      _
    $region7: #{tpu_custom_call.1} parent=1 // pred_check_branch
      %21 = sbr.rel (0) target = $region9
    $region8: #{tpu_custom_call.1} parent=1 // pred_region
      %s23 = ssub.s32 3072, 3072
      %24 = vsyncadd [#allocation5], %s23
      %s25 = sshll.u32 [#allocation4], 4
      %s26 = int_to_ptr.vmem [resolvable:$true] %s25
      %31 = dma.hbm_to_vmem [thread:$0]  %s1, 3072, %s26, [#allocation5], 64, 64, 4
    $region9: #{tpu_custom_call.1} parent=1 // pred_fallthru
      _
    // Predicated region
    $region10: #{tpu_custom_call.1} parent=1 // pred_check
      _
    $region11: #{tpu_custom_call.1} parent=1 // pred_check_branch
      %33 = sbr.rel (0) target = $region13
    $region12: #{tpu_custom_call.1} parent=1 // pred_region
      _
    $region13: #{tpu_custom_call.1} parent=1 // pred_fallthru
      _
    // Predicated region
    $region14: #{tpu_custom_call.1} parent=1 // pred_check
      _
    $region15: #{tpu_custom_call.1} parent=1 // pred_check_branch
      %35 = sbr.rel (0) target = $region17
    $region16: #{tpu_custom_call.1} parent=1 // pred_region
      %36 = dma.done [#allocation3], 128
    $region17: #{tpu_custom_call.1} parent=1 // pred_fallthru
      _
    // Predicated region
    $region18: #{tpu_custom_call.1} parent=1 // pred_check
      _
    $region19: #{tpu_custom_call.1} parent=1 // pred_check_branch
      %38 = sbr.rel (0) target = $region21
    $region20: #{tpu_custom_call.1} parent=1 // pred_region
      %39 = dma.done [#allocation5], 3072
    $region21: #{tpu_custom_call.1} parent=1 // pred_fallthru
      _
    %v41 = vld [vmem:[#allocation2] sm:$0xff]
    %v42 = vpack.c.bf16 %v41, %v41
    %v43 = vld [vmem:[%s2] sm:$0x7]
    %v44 = vld [vmem:[#allocation4] sm:$0xf]
    %v45 = vld [vmem:[#allocation4 + $0x4] sm:$0xf]
    %v46 = vlaneseq
    %v47 = vshrl.u32 %v46, 7
    %v48 = vsub.s32 0, %v47
    %v49 = vrot.slane %v43, %v48
    %v52 = vunpack.c.l.b16 %v44
    %v53 = vunpack.c.l.b16 %v45
    %v54 = vpack.c.b16 %v53, %v52
    %vm56 = vcmask 130048
    %v58 = vsel %vm56, %v42, 0
    %60 = vmatprep.subr.bf16.mxu0 0
    %61 = vmatpush1.bf16.msra.mxu0 %v54
    %62 = vmatprep.subr.bf16.mxu0 0
    %63 = vmatpush1.bf16.msra.mxu0 0
    %64 = vmatprep.subr.bf16.mxu0 0
    %65 = vmatpush1.bf16.msra.mxu0 0
    %66 = vmatprep.subr.bf16.mxu0 0
    %67 = vmatpush1.bf16.msra.mxu0 0
    %68 = vmatprep.subr.bf16.mxu0 0
    %69 = vmatpush1.bf16.msra.mxu0 0
    %70 = vmatprep.subr.bf16.mxu0 0
    %71 = vmatpush1.bf16.msra.mxu0 0
    %72 = vmatprep.subr.bf16.mxu0 0
    %73 = vmatpush1.bf16.msra.mxu0 0
    %74 = vmatprep.subr.bf16.mxu0 0
    %75 = vmatpush1.bf16.msra.mxu0 0
    %76 = vmatprep.subr.bf16.mxu0 0
    %77 = vmatpush1.bf16.msra.mxu0 0
    %78 = vmatprep.subr.bf16.mxu0 0
    %79 = vmatpush1.bf16.msra.mxu0 0
    %80 = vmatprep.subr.bf16.mxu0 0
    %81 = vmatpush1.bf16.msra.mxu0 0
    %82 = vmatprep.subr.bf16.mxu0 0
    %83 = vmatpush1.bf16.msra.mxu0 0
    %84 = vmatprep.subr.bf16.mxu0 0
    %85 = vmatpush1.bf16.msra.mxu0 0
    %86 = vmatprep.subr.bf16.mxu0 0
    %87 = vmatpush1.bf16.msra.mxu0 0
    %88 = vmatprep.subr.bf16.mxu0 0
    %89 = vmatpush1.bf16.msra.mxu0 0
    %90 = vmatprep.subr.bf16.mxu0 0
    %91 = vmatpush1.bf16.msra.mxu0 0
    %92 = vmatprep.mubr.bf16.mxu0 0
    %93 = vmatmul.mubr.bf16.gmra.mrb[0].mxu0 %v58
    %v94 = vpop.f32.mrb[0].mxu0
    %v95 = vadd.f32 %v49, %v94
    %v96 = vpop.f32.mrb[0].mxu0
    %v97 = vpop.f32.mrb[0].mxu0
    %v98 = vpop.f32.mrb[0].mxu0
    %99 = vdwg.mxu0
    %v100 = vmax.f32 %v95, 0.0
    %v101 = vpack.c.bf16 %v100, %v100
    %s102 = scalar_lea.vmem [#allocation4], 64
    %v103 = vld [vmem:[%s102] sm:$0xf]
    %v104 = vld [vmem:[%s102 + $0x4] sm:$0xf]
    %v105 = vld [vmem:[%s102 + $0x8] sm:$0xf]
    %v106 = vld [vmem:[%s102 + $0xc] sm:$0xf]
    %v107 = vld [vmem:[%s102 + $0x10] sm:$0xf]
    %v108 = vld [vmem:[%s102 + $0x14] sm:$0xf]
    %v109 = vld [vmem:[%s102 + $0x18] sm:$0xf]
    %v110 = vld [vmem:[%s102 + $0x1c] sm:$0xf]
    %v111 = vld [vmem:[%s102 + $0x20] sm:$0xf]
    %v112 = vld [vmem:[%s102 + $0x24] sm:$0xf]
    %v113 = vld [vmem:[%s102 + $0x28] sm:$0xf]
    %v114 = vld [vmem:[%s102 + $0x2c] sm:$0xf]
    %v115 = vld [vmem:[%s102 + $0x30] sm:$0xf]
    %v116 = vld [vmem:[%s102 + $0x34] sm:$0xf]
    %v117 = vld [vmem:[%s102 + $0x38] sm:$0xf]
    %v118 = vld [vmem:[%s102 + $0x3c] sm:$0xf]
    %v119 = vlaneseq
    %v120 = vshrl.u32 %v119, 7
    %v121 = vsub.s32 1, %v120
    %v122 = vrot.slane %v43, %v121
    %v139 = vunpack.c.l.b16 %v103
    %v140 = vunpack.c.l.b16 %v104
    %v141 = vunpack.c.l.b16 %v105
    %v142 = vunpack.c.l.b16 %v106
    %v143 = vunpack.c.l.b16 %v107
    %v144 = vunpack.c.l.b16 %v108
    %v145 = vunpack.c.l.b16 %v109
    %v146 = vunpack.c.l.b16 %v110
    %v147 = vunpack.c.l.b16 %v111
    %v148 = vunpack.c.l.b16 %v112
    %v149 = vunpack.c.l.b16 %v113
    %v150 = vunpack.c.l.b16 %v114
    %v151 = vunpack.c.l.b16 %v115
    %v152 = vunpack.c.l.b16 %v116
    %v153 = vunpack.c.l.b16 %v117
    %v154 = vunpack.c.l.b16 %v118
    %v155 = vpack.c.b16 %v140, %v139
    %v156 = vpack.c.b16 %v142, %v141
    %v157 = vpack.c.b16 %v144, %v143
    %v158 = vpack.c.b16 %v146, %v145
    %v159 = vpack.c.b16 %v148, %v147
    %v160 = vpack.c.b16 %v150, %v149
    %v161 = vpack.c.b16 %v152, %v151
    %v162 = vpack.c.b16 %v154, %v153
    %171 = vmatprep.subr.bf16.mxu0 0
    %172 = vmatpush1.bf16.msra.mxu0 %v155
    %173 = vmatprep.subr.bf16.mxu0 0
    %174 = vmatpush1.bf16.msra.mxu0 %v156
    %175 = vmatprep.subr.bf16.mxu0 0
    %176 = vmatpush1.bf16.msra.mxu0 %v157
    %177 = vmatprep.subr.bf16.mxu0 0
    %178 = vmatpush1.bf16.msra.mxu0 %v158
    %179 = vmatprep.subr.bf16.mxu0 0
    %180 = vmatpush1.bf16.msra.mxu0 %v159
    %181 = vmatprep.subr.bf16.mxu0 0
    %182 = vmatpush1.bf16.msra.mxu0 %v160
    %183 = vmatprep.subr.bf16.mxu0 0
    %184 = vmatpush1.bf16.msra.mxu0 %v161
    %185 = vmatprep.subr.bf16.mxu0 0
    %186 = vmatpush1.bf16.msra.mxu0 %v162
    %187 = vmatprep.subr.bf16.mxu0 0
    %188 = vmatpush1.bf16.msra.mxu0 0
    %189 = vmatprep.subr.bf16.mxu0 0
    %190 = vmatpush1.bf16.msra.mxu0 0
    %191 = vmatprep.subr.bf16.mxu0 0
    %192 = vmatpush1.bf16.msra.mxu0 0
    %193 = vmatprep.subr.bf16.mxu0 0
    %194 = vmatpush1.bf16.msra.mxu0 0
    %195 = vmatprep.subr.bf16.mxu0 0
    %196 = vmatpush1.bf16.msra.mxu0 0
    %197 = vmatprep.subr.bf16.mxu0 0
    %198 = vmatpush1.bf16.msra.mxu0 0
    %199 = vmatprep.subr.bf16.mxu0 0
    %200 = vmatpush1.bf16.msra.mxu0 0
    %201 = vmatprep.subr.bf16.mxu0 0
    %202 = vmatpush1.bf16.msra.mxu0 0
    %203 = vmatprep.mubr.bf16.mxu0 0
    %204 = vmatmul.mubr.bf16.gmra.mrb[0].mxu0 %v101
    %v205 = vpop.f32.mrb[0].mxu0
    %v206 = vadd.f32 %v122, %v205
    %v207 = vpop.f32.mrb[0].mxu0
    %v208 = vpop.f32.mrb[0].mxu0
    %v209 = vpop.f32.mrb[0].mxu0
    %210 = vdwg.mxu0
    %v211 = vmax.f32 %v206, 0.0
    %v212 = vpack.c.bf16 %v211, %v211
    %s213 = scalar_lea.vmem [#allocation4], 128
    %v214 = vld [vmem:[%s213] sm:$0xf]
    %v215 = vld [vmem:[%s213 + $0x4] sm:$0xf]
    %v216 = vld [vmem:[%s213 + $0x8] sm:$0xf]
    %v217 = vld [vmem:[%s213 + $0xc] sm:$0xf]
    %v218 = vld [vmem:[%s213 + $0x10] sm:$0xf]
    %v219 = vld [vmem:[%s213 + $0x14] sm:$0xf]
    %v220 = vld [vmem:[%s213 + $0x18] sm:$0xf]
    %v221 = vld [vmem:[%s213 + $0x1c] sm:$0xf]
    %v222 = vld [vmem:[%s213 + $0x20] sm:$0xf]
    %v223 = vld [vmem:[%s213 + $0x24] sm:$0xf]
    %v224 = vld [vmem:[%s213 + $0x28] sm:$0xf]
    %v225 = vld [vmem:[%s213 + $0x2c] sm:$0xf]
    %v226 = vld [vmem:[%s213 + $0x30] sm:$0xf]
    %v227 = vld [vmem:[%s213 + $0x34] sm:$0xf]
    %v228 = vld [vmem:[%s213 + $0x38] sm:$0xf]
    %v229 = vld [vmem:[%s213 + $0x3c] sm:$0xf]
    %v230 = vlaneseq
    %v231 = vshrl.u32 %v230, 7
    %v232 = vsub.s32 2, %v231
    %v233 = vrot.slane %v43, %v232
    %v250 = vunpack.c.l.b16 %v214
    %v251 = vunpack.c.l.b16 %v215
    %v252 = vunpack.c.l.b16 %v216
    %v253 = vunpack.c.l.b16 %v217
    %v254 = vunpack.c.l.b16 %v218
    %v255 = vunpack.c.l.b16 %v219
    %v256 = vunpack.c.l.b16 %v220
    %v257 = vunpack.c.l.b16 %v221
    %v258 = vunpack.c.l.b16 %v222
    %v259 = vunpack.c.l.b16 %v223
    %v260 = vunpack.c.l.b16 %v224
    %v261 = vunpack.c.l.b16 %v225
    %v262 = vunpack.c.l.b16 %v226
    %v263 = vunpack.c.l.b16 %v227
    %v264 = vunpack.c.l.b16 %v228
    %v265 = vunpack.c.l.b16 %v229
    %v266 = vpack.c.b16 %v251, %v250
    %v267 = vpack.c.b16 %v253, %v252
    %v268 = vpack.c.b16 %v255, %v254
    %v269 = vpack.c.b16 %v257, %v256
    %v270 = vpack.c.b16 %v259, %v258
    %v271 = vpack.c.b16 %v261, %v260
    %v272 = vpack.c.b16 %v263, %v262
    %v273 = vpack.c.b16 %v265, %v264
    %282 = vmatprep.subr.bf16.mxu0 0
    %283 = vmatpush1.bf16.msra.mxu0 %v266
    %284 = vmatprep.subr.bf16.mxu0 0
    %285 = vmatpush1.bf16.msra.mxu0 %v267
    %286 = vmatprep.subr.bf16.mxu0 0
    %287 = vmatpush1.bf16.msra.mxu0 %v268
    %288 = vmatprep.subr.bf16.mxu0 0
    %289 = vmatpush1.bf16.msra.mxu0 %v269
    %290 = vmatprep.subr.bf16.mxu0 0
    %291 = vmatpush1.bf16.msra.mxu0 %v270
    %292 = vmatprep.subr.bf16.mxu0 0
    %293 = vmatpush1.bf16.msra.mxu0 %v271
    %294 = vmatprep.subr.bf16.mxu0 0
    %295 = vmatpush1.bf16.msra.mxu0 %v272
    %296 = vmatprep.subr.bf16.mxu0 0
    %297 = vmatpush1.bf16.msra.mxu0 %v273
    %298 = vmatprep.subr.bf16.mxu0 0
    %299 = vmatpush1.bf16.msra.mxu0 0
    %300 = vmatprep.subr.bf16.mxu0 0
    %301 = vmatpush1.bf16.msra.mxu0 0
    %302 = vmatprep.subr.bf16.mxu0 0
    %303 = vmatpush1.bf16.msra.mxu0 0
    %304 = vmatprep.subr.bf16.mxu0 0
    %305 = vmatpush1.bf16.msra.mxu0 0
    %306 = vmatprep.subr.bf16.mxu0 0
    %307 = vmatpush1.bf16.msra.mxu0 0
    %308 = vmatprep.subr.bf16.mxu0 0
    %309 = vmatpush1.bf16.msra.mxu0 0
    %310 = vmatprep.subr.bf16.mxu0 0
    %311 = vmatpush1.bf16.msra.mxu0 0
    %312 = vmatprep.subr.bf16.mxu0 0
    %313 = vmatpush1.bf16.msra.mxu0 0
    %314 = vmatprep.mubr.bf16.mxu0 0
    %315 = vmatmul.mubr.bf16.gmra.mrb[0].mxu0 %v212
    %v316 = vpop.f32.mrb[0].mxu0
    %v317 = vadd.f32 %v233, %v316
    %v318 = vpop.f32.mrb[0].mxu0
    %v319 = vpop.f32.mrb[0].mxu0
    %v320 = vpop.f32.mrb[0].mxu0
    %321 = vdwg.mxu0
    %vm322 = vcmask 31744
    %323 = vst.msk [vmem:[%s3] sm:$0xff] %vm322, %v317
    // Predicated region
    $region22: #{tpu_custom_call.1} parent=1 // pred_check
      _
    $region23: #{tpu_custom_call.1} parent=1 // pred_check_branch
      %325 = sbr.rel (0) target = $region25
    $region24: #{tpu_custom_call.1} parent=1 // pred_region
      _
    $region25: #{tpu_custom_call.1} parent=1 // pred_fallthru
      _
    // Predicated region
    $region26: #{tpu_custom_call.1} parent=1 // pred_check
      _
    $region27: #{tpu_custom_call.1} parent=1 // pred_check_branch
      %327 = sbr.rel (0) target = $region29
    $region28: #{tpu_custom_call.1} parent=1 // pred_region
      _
    $region29: #{tpu_custom_call.1} parent=1 // pred_fallthru
      _
    %328 = vsyncpa [#allocation3], 1
    %329 = vsyncpa [#allocation5], 1

</llo_original>
